<compile_context>
chip_gen: v7x
topology: tpu7x:2x2x1
jax: 0.10.0
libtpu: 0.0.40
codegen_flags: <defaults>
</compile_context>

<pallas_src>
import functools
import math

import jax
import jax.numpy as jnp
from jax.experimental import pallas as pl
from jax.experimental.pallas import tpu as pltpu


def _roberta_output_kernel(x_ref, w_ref, p_ref, o_ref, *, eps):
    """x_ref: (TM, K)  w_ref: (K, H)  p_ref: (3, H)=[bias; gamma; beta]  o_ref: (TM, H)."""
    # Dense matmul on the MXU, f32 accumulation regardless of input dtype.
    h = jnp.dot(x_ref[...], w_ref[...], preferred_element_type=jnp.float32)
    h = h + p_ref[0:1, :]                      # fused bias add (f32)
    # Dropout (self.dropout) is identity in eval mode.
    # TODO(synk): training-mode dropout (stochastic masking) not implemented.
    mean = jnp.mean(h, axis=-1, keepdims=True)
    cent = h - mean
    var = jnp.mean(cent * cent, axis=-1, keepdims=True)
    normed = cent * jax.lax.rsqrt(var + eps)   # rsqrt -> EUP, keeps the VPU epilogue lean
    o_ref[...] = (normed * p_ref[1:2, :] + p_ref[2:3, :]).astype(o_ref.dtype)


def roberta_output_forward(hidden_states, input_tensor, params, *, eps=1e-5,
                           tm=256, compute_dtype=None):
    """hidden_states: (B, S, K); input_tensor: (B, S, H) (accepted but unused,
    matching the reference module's forward, which ignores it). Returns (B, S, H).

    tm:            row tile over batch*seq (sweepable; 128-512 recommended).
    compute_dtype: e.g. jnp.bfloat16 to feed the MXU bf16 inputs (f32
                   accumulation + f32 LayerNorm are kept). None = keep dtype.
    """
    del input_tensor  # unused by the reference forward (no residual add in the spec)
    w, b, gamma, beta = params["w"], params["b"], params["gamma"], params["beta"]
    B, S, K = hidden_states.shape
    H = w.shape[1]
    M = B * S
    out_dtype = hidden_states.dtype

    x2d = hidden_states.reshape(M, K)
    if compute_dtype is not None:
        x2d = x2d.astype(compute_dtype)
        w = w.astype(compute_dtype)
    # LayerNorm / bias parameters stay f32 for accuracy; packed into one operand.
    lnp = jnp.stack(
        [b.astype(jnp.float32), gamma.astype(jnp.float32), beta.astype(jnp.float32)],
        axis=0,
    )  # (3, H)

    # Row tile: as large as possible, multiple of 8 sublanes, never larger than M.
    tm_eff = max(8, (min(tm, M) // 8) * 8)
    m_pad = math.ceil(M / tm_eff) * tm_eff
    if m_pad != M:
        # Zero-pad rows; padded rows are LayerNorm'ed harmlessly and sliced off below.
        x2d = jnp.pad(x2d, ((0, m_pad - M), (0, 0)))
    grid = (m_pad // tm_eff,)

    kernel = functools.partial(_roberta_output_kernel, eps=eps)

    # VMEM budget: double-buffered activation/output tiles + resident weight
    # (also double-buffered by the BlockSpec pipeline) + f32 intermediates.
    x_bytes = jnp.dtype(x2d.dtype).itemsize
    w_bytes = jnp.dtype(w.dtype).itemsize
    o_bytes = jnp.dtype(out_dtype).itemsize
    est = (2 * tm_eff * K * x_bytes               # x tile, double buffered
           + 2 * tm_eff * H * o_bytes             # out tile, double buffered
           + 2 * (K * H * w_bytes + 3 * H * 4)    # resident weight + LN params
           + 4 * tm_eff * H * 4)                  # f32 matmul result / LN temporaries
    vmem_limit = int(min(max(2 * est, 32 * 1024 * 1024), 128 * 1024 * 1024))

    cost = pl.CostEstimate(
        flops=2 * m_pad * K * H + 8 * m_pad * H,
        transcendentals=m_pad,                     # one rsqrt per row
        bytes_accessed=(m_pad * K * x_bytes + K * H * w_bytes
                        + 3 * H * 4 + M * H * o_bytes),
    )

    out2d = pl.pallas_call(
        kernel,
        out_shape=jax.ShapeDtypeStruct((m_pad, H), out_dtype),
        grid_spec=pltpu.PrefetchScalarGridSpec(
            num_scalar_prefetch=0,
            grid=grid,
            in_specs=[
                pl.BlockSpec((tm_eff, K), lambda i: (i, 0)),  # activation tile
                pl.BlockSpec((K, H), lambda i: (0, 0)),       # resident dense weight
                pl.BlockSpec((3, H), lambda i: (0, 0)),       # packed bias/gamma/beta
            ],
            out_specs=pl.BlockSpec((tm_eff, H), lambda i: (i, 0)),
        ),
        compiler_params=pltpu.CompilerParams(
            dimension_semantics=("parallel",),
            vmem_limit_bytes=vmem_limit,
        ),
        cost_estimate=cost,
    )(x2d, w, lnp)

    if m_pad != M:
        out2d = out2d[:M]
    return out2d.reshape(B, S, H)


def init_params(key, intermediate_size, hidden_size, dtype=jnp.float32):
    k_w, k_b = jax.random.split(key)
    # Deterministic synthetic init (roughly Linear-like scale).
    bound = 1.0 / (intermediate_size ** 0.5)
    w = jax.random.uniform(k_w, (intermediate_size, hidden_size), dtype,
                           minval=-bound, maxval=bound)
    b = jax.random.uniform(k_b, (hidden_size,), dtype, minval=-bound, maxval=bound)
    gamma = jnp.ones((hidden_size,), dtype)
    beta = jnp.zeros((hidden_size,), dtype)
    return {"w": w, "b": b, "gamma": gamma, "beta": beta}


if __name__ == "__main__":
    # Small shapes consistent with the module: (batch, seq, intermediate) -> (batch, seq, hidden)
    BATCH, SEQ = 2, 8
    INTERMEDIATE, HIDDEN = 128, 64
    EPS = 1e-5

    key = jax.random.PRNGKey(0)
    k_x, k_res, k_p = jax.random.split(key, 3)

    hidden_states = jax.random.normal(k_x, (BATCH, SEQ, INTERMEDIATE), jnp.float32)
    input_tensor = jax.random.normal(k_res, (BATCH, SEQ, HIDDEN), jnp.float32)
    params = init_params(k_p, INTERMEDIATE, HIDDEN)

    # f32 path (strict check vs pure-JAX reference).
    out = roberta_output_forward(hidden_states, input_tensor, params, eps=EPS)
    out = jax.block_until_ready(out)

    def ref(x, params):
        h = jnp.einsum("bsk,kh->bsh", x, params["w"]) + params["b"]
        mean = jnp.mean(h, axis=-1, keepdims=True)
        var = jnp.mean((h - mean) ** 2, axis=-1, keepdims=True)
        return (h - mean) * jax.lax.rsqrt(var + EPS) * params["gamma"] + params["beta"]

    expected = ref(hidden_states, params)
    assert out.shape == (BATCH, SEQ, HIDDEN)
    assert jnp.allclose(out, expected, atol=1e-4, rtol=1e-4), "mismatch vs reference (f32)"

    # bf16-compute path (MXU-friendly on v6e/v7x); loose tolerance.
    out_bf16 = roberta_output_forward(hidden_states, input_tensor, params, eps=EPS,
                                      compute_dtype=jnp.bfloat16)
    out_bf16 = jax.block_until_ready(out_bf16)
    assert out_bf16.shape == (BATCH, SEQ, HIDDEN)
    assert jnp.allclose(out_bf16.astype(jnp.float32), expected, atol=1e-1, rtol=1e-1), \
        "mismatch vs reference (bf16 compute)"

    print("KERNEL_OK")
</pallas_src>

<mosaic_0001>
module attributes {stable_mosaic.version = 11 : i64} {
  func.func @_roberta_output_kernel(%arg0: i32, %arg1: memref<16x128xf32, #tpu.memory_space<vmem>>, %arg2: memref<128x64xf32, #tpu.memory_space<vmem>>, %arg3: memref<3x64xf32, #tpu.memory_space<vmem>>, %arg4: memref<16x64xf32, #tpu.memory_space<vmem>>) attributes {dimension_semantics = [#tpu.dimension_semantics<parallel>], iteration_bounds = array<i64: 1>, scalar_prefetch = 0 : i64, scratch_operands = 0 : i64, tpu.core_type = #tpu.core_type<tc>, window_params = [{transform_indices = @transform_0, window_bounds = array<i64: 16, 128>}, {pipeline_mode = #tpu.pipeline_mode<synchronous>, transform_indices = @transform_1, window_bounds = array<i64: 128, 64>}, {pipeline_mode = #tpu.pipeline_mode<synchronous>, transform_indices = @transform_2, window_bounds = array<i64: 3, 64>}, {transform_indices = @transform_3, window_bounds = array<i64: 16, 64>}]} {
    %c0 = arith.constant 0 : index
    %c0_0 = arith.constant 0 : index
    %0 = vector.load %arg1[%c0, %c0_0] : memref<16x128xf32, #tpu.memory_space<vmem>>, vector<16x128xf32>
    %c0_1 = arith.constant 0 : index
    %c0_2 = arith.constant 0 : index
    %1 = vector.load %arg2[%c0_1, %c0_2] : memref<128x64xf32, #tpu.memory_space<vmem>>, vector<128x64xf32>
    %cst = arith.constant dense<0.000000e+00> : vector<16x64xf32>
    %2 = tpu.matmul %0, %1, %cst {dimension_numbers = #tpu.dot_dimension_numbers<[1], [0], [0], [1], [0, 0, 1, 1], [], []>} : vector<16x128xf32>, vector<128x64xf32>, vector<16x64xf32> -> vector<16x64xf32>
    %c0_3 = arith.constant 0 : index
    %c0_4 = arith.constant 0 : index
    %3 = vector.load %arg3[%c0_3, %c0_4] : memref<3x64xf32, #tpu.memory_space<vmem>>, vector<1x64xf32>
    %4 = vector.broadcast %3 : vector<1x64xf32> to vector<16x64xf32>
    %5 = arith.addf %2, %4 : vector<16x64xf32>
    %cst_5 = arith.constant dense<0.000000e+00> : vector<16xf32>
    %6 = vector.multi_reduction <add>, %5, %cst_5 [1] : vector<16x64xf32> to vector<16xf32>
    %7 = vector.shape_cast %6 : vector<16xf32> to vector<16x1xf32>
    %cst_6 = arith.constant 6.400000e+01 : f32
    %8 = vector.broadcast %cst_6 : f32 to vector<16x1xf32>
    %9 = arith.divf %7, %8 : vector<16x1xf32>
    %10 = vector.broadcast %9 : vector<16x1xf32> to vector<16x64xf32>
    %11 = arith.subf %5, %10 : vector<16x64xf32>
    %12 = arith.mulf %11, %11 : vector<16x64xf32>
    %cst_7 = arith.constant dense<0.000000e+00> : vector<16xf32>
    %13 = vector.multi_reduction <add>, %12, %cst_7 [1] : vector<16x64xf32> to vector<16xf32>
    %14 = vector.shape_cast %13 : vector<16xf32> to vector<16x1xf32>
    %cst_8 = arith.constant 6.400000e+01 : f32
    %15 = vector.broadcast %cst_8 : f32 to vector<16x1xf32>
    %16 = arith.divf %14, %15 : vector<16x1xf32>
    %cst_9 = arith.constant 9.99999974E-6 : f32
    %17 = vector.broadcast %cst_9 : f32 to vector<16x1xf32>
    %18 = arith.addf %16, %17 : vector<16x1xf32>
    %19 = math.rsqrt %18 : vector<16x1xf32>
    %20 = vector.broadcast %19 : vector<16x1xf32> to vector<16x64xf32>
    %21 = arith.mulf %11, %20 : vector<16x64xf32>
    %c1 = arith.constant 1 : index
    %c0_10 = arith.constant 0 : index
    %22 = vector.load %arg3[%c1, %c0_10] : memref<3x64xf32, #tpu.memory_space<vmem>>, vector<1x64xf32>
    %23 = vector.broadcast %22 : vector<1x64xf32> to vector<16x64xf32>
    %24 = arith.mulf %21, %23 : vector<16x64xf32>
    %c2 = arith.constant 2 : index
    %c0_11 = arith.constant 0 : index
    %25 = vector.load %arg3[%c2, %c0_11] : memref<3x64xf32, #tpu.memory_space<vmem>>, vector<1x64xf32>
    %26 = vector.broadcast %25 : vector<1x64xf32> to vector<16x64xf32>
    %27 = arith.addf %24, %26 : vector<16x64xf32>
    %c0_12 = arith.constant 0 : index
    %c0_13 = arith.constant 0 : index
    %28 = vector.load %arg4[%c0_12, %c0_13] : memref<16x64xf32, #tpu.memory_space<vmem>>, vector<16x64xf32>
    tpu.vector_store %arg4[%c0_12, %c0_13], %27 {strides = array<i32>} : memref<16x64xf32, #tpu.memory_space<vmem>>, vector<16x64xf32>,
    return
  }
  func.func @transform_0(%arg0: i32) -> (i32, i32) {
    %c0_i32 = arith.constant 0 : i32
    %c0_i32_0 = arith.constant 0 : i32
    return %arg0, %c0_i32 : i32, i32
  }
  func.func @transform_1(%arg0: i32) -> (i32, i32) {
    %c0_i32 = arith.constant 0 : i32
    %c0_i32_0 = arith.constant 0 : i32
    %c0_i32_1 = arith.constant 0 : i32
    return %c0_i32, %c0_i32_0 : i32, i32
  }
  func.func @transform_2(%arg0: i32) -> (i32, i32) {
    %c0_i32 = arith.constant 0 : i32
    %c0_i32_0 = arith.constant 0 : i32
    %c0_i32_1 = arith.constant 0 : i32
    return %c0_i32, %c0_i32_0 : i32, i32
  }
  func.func @transform_3(%arg0: i32) -> (i32, i32) {
    %c0_i32 = arith.constant 0 : i32
    %c0_i32_0 = arith.constant 0 : i32
    return %arg0, %c0_i32 : i32, i32
  }
}

</mosaic_0001>

<llo_original>
// kernel: tpu_custom_call.1
$region0: #{tpu_custom_call.1}
  #allocation0 [shape = 'u32[]', space=smem, size = 0x4, offset = 0x4, fixed_abs, tag = 'smem constant byte address 0x4 - core index']
  #allocation1 [shape = 'u32[144,128]{1,0:T(1,128)}', space=vmem, size = 0x12000, scoped, tag = 'internal scratch']
  %s0 = inlined_call_operand.vmem [shape: f32[16,128], index: 0, kind: input, shape index: {}]
  %s1 = inlined_call_operand.vmem [shape: f32[128,64], index: 1, kind: input, shape index: {}]
  %s2 = inlined_call_operand.vmem [shape: f32[3,64], index: 2, kind: input, shape index: {}]
  %s3 = inlined_call_operand.hbm [shape: f32[16,64], index: 3, kind: output, shape index: {}]
  %s4 = sld [smem:[#allocation0]]
  $region22: #{tpu_custom_call.1} parent=0
    _
  %s6 = ssub.s32 1, %s4
  %s7 = scalar_select 0, %s6, %s4
  $region1: #{tpu_custom_call.1} parent=0
    #allocation2 [shape = 'u8[8192]{0}', space=vmem, size = 0x2000, scoped, tag = 'output window, operand 0, single buffered']
    #allocation3 [shape = 's32[1]{0}', space=sflag, size = 0x4, scoped, tag = 'scoped memory for tpu_custom_call.1']
    %8 = vsyncpa [#allocation3], 0
    // Predicated region
    $region2: #{tpu_custom_call.1} parent=1 // pred_check
      _
    $region3: #{tpu_custom_call.1} parent=1 // pred_check_branch
      %10 = sbr.rel (0) target = $region5
    $region4: #{tpu_custom_call.1} parent=1 // pred_region
      _
    $region5: #{tpu_custom_call.1} parent=1 // pred_fallthru
      _
    // Predicated region
    $region6: #{tpu_custom_call.1} parent=1 // pred_check
      _
    $region7: #{tpu_custom_call.1} parent=1 // pred_check_branch
      %12 = sbr.rel (0) target = $region9
    $region8: #{tpu_custom_call.1} parent=1 // pred_region
      _
    $region9: #{tpu_custom_call.1} parent=1 // pred_fallthru
      _
    // Predicated region
    $region10: #{tpu_custom_call.1} parent=1 // pred_check
      _
    $region11: #{tpu_custom_call.1} parent=1 // pred_check_branch
      %14 = sbr.rel (0) target = $region13
    $region12: #{tpu_custom_call.1} parent=1 // pred_region
      _
    $region13: #{tpu_custom_call.1} parent=1 // pred_fallthru
      _
    %v15 = vld [vmem:[%s0] sm:$0xff]
    %v16 = vld [vmem:[%s0 + $0x8] sm:$0xff]
    %v17 = vld [vmem:[%s1] sm:$0xff]
    %v18 = vld [vmem:[%s1 + $0x8] sm:$0xff]
    %v19 = vld [vmem:[%s1 + $0x10] sm:$0xff]
    %v20 = vld [vmem:[%s1 + $0x18] sm:$0xff]
    %v21 = vld [vmem:[%s1 + $0x20] sm:$0xff]
    %v22 = vld [vmem:[%s1 + $0x28] sm:$0xff]
    %v23 = vld [vmem:[%s1 + $0x30] sm:$0xff]
    %v24 = vld [vmem:[%s1 + $0x38] sm:$0xff]
    %v25 = vld [vmem:[%s1 + $0x40] sm:$0xff]
    %v26 = vld [vmem:[%s1 + $0x48] sm:$0xff]
    %v27 = vld [vmem:[%s1 + $0x50] sm:$0xff]
    %v28 = vld [vmem:[%s1 + $0x58] sm:$0xff]
    %v29 = vld [vmem:[%s1 + $0x60] sm:$0xff]
    %v30 = vld [vmem:[%s1 + $0x68] sm:$0xff]
    %v31 = vld [vmem:[%s1 + $0x70] sm:$0xff]
    %v32 = vld [vmem:[%s1 + $0x78] sm:$0xff]
    %v33 = vld [vmem:[%s2] sm:$0x1]
    %v34 = vlaneseq
    %v35 = vshrl.u32 %v34, 7
    %v36 = vsub.s32 0, %v35
    %v37 = vrot.slane %v33, %v36
    %38 = vmatprep.subr.mxu0 0.0
    %39 = vmatpush1.msra.mxu0 %v17
    %40 = vmatprep.subr.mxu0 0.0
    %41 = vmatpush1.msra.mxu0 %v18
    %42 = vmatprep.subr.mxu0 0.0
    %43 = vmatpush1.msra.mxu0 %v19
    %44 = vmatprep.subr.mxu0 0.0
    %45 = vmatpush1.msra.mxu0 %v20
    %46 = vmatprep.subr.mxu0 0.0
    %47 = vmatpush1.msra.mxu0 %v21
    %48 = vmatprep.subr.mxu0 0.0
    %49 = vmatpush1.msra.mxu0 %v22
    %50 = vmatprep.subr.mxu0 0.0
    %51 = vmatpush1.msra.mxu0 %v23
    %52 = vmatprep.subr.mxu0 0.0
    %53 = vmatpush1.msra.mxu0 %v24
    %54 = vmatprep.subr.mxu0 0.0
    %55 = vmatpush1.msra.mxu0 %v25
    %56 = vmatprep.subr.mxu0 0.0
    %57 = vmatpush1.msra.mxu0 %v26
    %58 = vmatprep.subr.mxu0 0.0
    %59 = vmatpush1.msra.mxu0 %v27
    %60 = vmatprep.subr.mxu0 0.0
    %61 = vmatpush1.msra.mxu0 %v28
    %62 = vmatprep.subr.mxu0 0.0
    %63 = vmatpush1.msra.mxu0 %v29
    %64 = vmatprep.subr.mxu0 0.0
    %65 = vmatpush1.msra.mxu0 %v30
    %66 = vmatprep.subr.mxu0 0.0
    %67 = vmatpush1.msra.mxu0 %v31
    %68 = vmatprep.subr.mxu0 0.0
    %69 = vmatpush1.msra.mxu0 %v32
    %70 = vmatprep.subr.mxu0 0.0
    %71 = vmatpush1.msra.mxu0 0.0
    %72 = vmatprep.subr.mxu0 0.0
    %73 = vmatpush1.msra.mxu0 0.0
    %74 = vmatprep.subr.mxu0 0.0
    %75 = vmatpush1.msra.mxu0 0.0
    %76 = vmatprep.subr.mxu0 0.0
    %77 = vmatpush1.msra.mxu0 0.0
    %78 = vmatprep.subr.mxu0 0.0
    %79 = vmatpush1.msra.mxu0 0.0
    %80 = vmatprep.subr.mxu0 0.0
    %81 = vmatpush1.msra.mxu0 0.0
    %82 = vmatprep.subr.mxu0 0.0
    %83 = vmatpush1.msra.mxu0 0.0
    %84 = vmatprep.subr.mxu0 0.0
    %85 = vmatpush1.msra.mxu0 0.0
    %86 = vmatprep.subr.mxu0 0.0
    %87 = vmatpush1.msra.mxu0 0.0
    %88 = vmatprep.subr.mxu0 0.0
    %89 = vmatpush1.msra.mxu0 0.0
    %90 = vmatprep.subr.mxu0 0.0
    %91 = vmatpush1.msra.mxu0 0.0
    %92 = vmatprep.subr.mxu0 0.0
    %93 = vmatpush1.msra.mxu0 0.0
    %94 = vmatprep.subr.mxu0 0.0
    %95 = vmatpush1.msra.mxu0 0.0
    %96 = vmatprep.subr.mxu0 0.0
    %97 = vmatpush1.msra.mxu0 0.0
    %98 = vmatprep.subr.mxu0 0.0
    %99 = vmatpush1.msra.mxu0 0.0
    %100 = vmatprep.subr.mxu0 0.0
    %101 = vmatpush1.msra.mxu0 0.0
    %102 = vmatprep.mubr.f32.mxu0 0.0
    %103 = vmatmul.mubr.f32.gmra.mrb[0].mxu0 %v15
    %v104 = vpop.f32.mrb[0].mxu0
    %v105 = vadd.f32 %v37, %v104
    %v106 = vpop.f32.mrb[0].mxu0
    %107 = vmatprep.mubr.f32.mxu0 0.0
    %108 = vmatmul.mubr.f32.gmra.mrb[0].mxu0 %v16
    %v109 = vpop.f32.mrb[0].mxu0
    %v110 = vadd.f32 %v37, %v109
    %v111 = vpop.f32.mrb[0].mxu0
    %112 = vdwg.mxu0
    %vm113 = vcmask 523264
    %v114 = vsel %vm113, %v105, 0.0
    %115 = vadd.xlane.f32.xlu0 %v114
    %v116 = vpop.xlane.xlu0 %115
    %v117 = vsel %vm113, %v110, 0.0
    %118 = vadd.xlane.f32.xlu0 %v117
    %v119 = vpop.xlane.xlu0 %118
    %v120 = vrcp.pop 64.0
    %v121 = vmul.f32 %v116, %v120
    %v122 = vmul.f32 %v119, %v120
    %v123 = vsub.f32 %v105, %v121
    %v124 = vsub.f32 %v110, %v122
    %v125 = vmul.f32 %v123, %v123
    %v126 = vmul.f32 %v124, %v124
    %v127 = vsel %vm113, %v125, 0.0
    %128 = vadd.xlane.f32.xlu0 %v127
    %v129 = vpop.xlane.xlu0 %128
    %v130 = vsel %vm113, %v126, 0.0
    %131 = vadd.xlane.f32.xlu0 %v130
    %v132 = vpop.xlane.xlu0 %131
    %v133 = vmul.f32 %v129, %v120
    %v134 = vmul.f32 %v132, %v120
    %v135 = vadd.f32 %v133, 1e-05
    %v136 = vadd.f32 %v134, 1e-05
    %v137 = vrsqrt.pop %v135
    %v138 = vrsqrt.pop %v136
    %v139 = vmul.f32 %v123, %v137
    %v140 = vmul.f32 %v124, %v138
    %v141 = vld [vmem:[%s2 + $0x1] sm:$0x1]
    %v142 = vlaneseq
    %v143 = vshrl.u32 %v142, 7
    %v144 = vsub.s32 0, %v143
    %v145 = vrot.slane %v141, %v144
    %v146 = vmul.f32 %v139, %v145
    %v147 = vmul.f32 %v140, %v145
    %v148 = vld [vmem:[%s2 + $0x2] sm:$0x1]
    %v149 = vlaneseq
    %v150 = vshrl.u32 %v149, 7
    %v151 = vsub.s32 0, %v150
    %v152 = vrot.slane %v148, %v151
    %v153 = vadd.f32 %v146, %v152
    %v154 = vadd.f32 %v147, %v152
    %155 = vst.msk [vmem:[#allocation2] sm:$0xff] %vm113, %v153
    %156 = vst.msk [vmem:[#allocation2 + $0x8] sm:$0xff] %vm113, %v154
    // Predicated region
    $region14: #{tpu_custom_call.1} parent=1 // pred_check
      _
    $region15: #{tpu_custom_call.1} parent=1 // pred_check_branch
      %158 = sbr.rel (0) target = $region17
    $region16: #{tpu_custom_call.1} parent=1 // pred_region
      %s160 = ssub.s32 256, 256
      %161 = vsyncadd [#allocation3], %s160
      %s162 = sshll.u32 [#allocation2], 4
      %s163 = int_to_ptr.vmem [resolvable:$true] %s162
      %168 = dma.vmem_to_hbm [thread:$0]  %s163, 256, %s3, [#allocation3], 128, 128, 8
    $region17: #{tpu_custom_call.1} parent=1 // pred_fallthru
      _
    // Predicated region
    $region18: #{tpu_custom_call.1} parent=1 // pred_check
      _
    $region19: #{tpu_custom_call.1} parent=1 // pred_check_branch
      %170 = sbr.rel (0) target = $region21
    $region20: #{tpu_custom_call.1} parent=1 // pred_region
      %171 = dma.done [#allocation3], 256
    $region21: #{tpu_custom_call.1} parent=1 // pred_fallthru
      _
    %172 = vsyncpa [#allocation3], 1

</llo_original>
